<compile_context>
chip_gen: v7x
topology: tpu7x:2x2x1
jax: 0.10.0
libtpu: 0.0.40
codegen_flags: <defaults>
</compile_context>

<pallas_src>
import functools

import jax
import jax.numpy as jnp
from jax.experimental import pallas as pl
from jax.experimental.pallas import tpu as pltpu


# ----------------------------------------------------------------------------
# Small helpers
# ----------------------------------------------------------------------------
def _round_up(x: int, m: int) -> int:
    return (x + m - 1) // m * m


def _min_sublane(dtype) -> int:
    """Minimum second-minor tile for this dtype (8 f32, 16 bf16, 32 int8/fp8)."""
    itemsize = jnp.dtype(dtype).itemsize
    return max(8, 32 // max(itemsize, 1))


def _device_kind() -> str:
    try:
        return jax.devices()[0].device_kind.lower()
    except Exception:  # pragma: no cover - CPU/interpret fallback
        return ""


def _tpu_generation() -> str:
    k = _device_kind()
    if "v5 lite" in k or "v5e" in k or "v5litepod" in k:
        return "v5e"
    if "v6" in k or "trillium" in k:
        return "v6e"
    if "v7" in k:
        return "v7"
    if "v5p" in k or "v5" in k:
        return "v5p"
    if "v4" in k:
        return "v4"
    return "unknown"


def _tensorcores_per_chip(gen: str) -> int:
    # v7x / v5p / v4 have 2 TensorCores per chip; v5e / v6e have 1.
    return 2 if gen in ("v7", "v5p", "v4") else 1


def _vmem_capacity_bytes(gen: str) -> int:
    try:
        cap = int(pltpu.get_tpu_info().vmem_capacity_bytes)
        if cap > 0:
            return cap
    except Exception:
        pass
    return {
        "v7": 64 << 20,
        "v6e": 128 << 20,
        "v5e": 128 << 20,
        "v5p": 128 << 20,
        "v4": 128 << 20,
    }.get(gen, 64 << 20)  # conservative fallback works on every generation


def _pick_divisor_tile(total: int, desired: int, step: int = 128) -> int:
    """Largest multiple of `step` <= desired that divides `total` (fallbacks)."""
    t = min(desired, total)
    if total <= step:
        return total
    t = max(step, (t // step) * step)
    while t > step and total % t != 0:
        t -= step
    return t if total % t == 0 else total


def _vmem_estimate(tm, ti, H, b_in, b_w, b_out, wbuf) -> int:
    """Working-set estimate, including compiler-internal f32 intermediates."""
    return (
        2 * tm * H * b_in            # x tiles (double-buffered)
        + wbuf * H * (2 * ti) * b_w  # merged gate|up weight tiles
        + wbuf * ti * H * b_w        # down-proj weight tiles
        + 2 * tm * H * b_out         # output tiles
        + tm * H * 4                 # f32 accumulator scratch
        + tm * (2 * ti) * 4          # f32 gate_up MXU result
        + tm * ti * b_in             # activation cast back for down_proj dot
    )


# ----------------------------------------------------------------------------
# Kernel
# ----------------------------------------------------------------------------
def _llama_mlp_kernel(x_ref, wgu_ref, wd_ref, o_ref, acc_ref, *, red_axis):
    """One grid step over (token tile, intermediate tile [, core split]).

    x_ref:   (TM, H)       token tile (constant across the reduction axis)
    wgu_ref: (H, 2*TI)     merged [gate | up] weight tile, input-major
    wd_ref:  (TI, H)       down-proj weight tile, input-major
    o_ref:   (TM, H)       output tile (written only on the last reduction step)
    acc_ref: (TM, H) f32   down-proj accumulator across the reduction axis
    """
    j = pl.program_id(red_axis)

    @pl.when(j == 0)
    def _():
        acc_ref[...] = jnp.zeros_like(acc_ref)

    ti = wd_ref.shape[0]
    x = x_ref[...]  # native dtype (bf16/f32) straight to the MXU

    # Fused gate+up projection: one MXU matmul with N = 2*TI, f32 accumulation.
    gate_up = jnp.dot(x, wgu_ref[...], preferred_element_type=jnp.float32)
    gate = gate_up[:, :ti]
    up = gate_up[:, ti:]

    # SiluAndMul in f32, then cast back to the activation dtype for the MXU.
    act = (gate * jax.nn.sigmoid(gate) * up).astype(x.dtype)

    # Partial down_proj for this intermediate tile, accumulated in f32 scratch.
    acc_ref[...] += jnp.dot(act, wd_ref[...], preferred_element_type=jnp.float32)

    @pl.when(j == pl.num_programs(red_axis) - 1)
    def _():
        o_ref[...] = acc_ref[...].astype(o_ref.dtype)


# ----------------------------------------------------------------------------
# Weight preparation (one-time, at load)
# ----------------------------------------------------------------------------
def prepare_llama_mlp_weights(w_gate_up, w_down, *, ti=None):
    """One-time re-layout of the torch-convention weights into tile-major form.

    w_gate_up: [2*I, H]  torch [out, in]; rows [0:I] = gate, rows [I:2I] = up.
    w_down:    [H, I]    torch [out, in].
    ti:        intermediate tile; default is generation-aware (1024 on v5e,
               512 elsewhere), clamped/adjusted to divide I.

    Returns:
      w_gu: [n, H, 2*ti]  input-major; tile j = [gate_block_j | up_block_j],
                          contiguous per tile so one BlockSpec slice = one
                          long contiguous weight DMA.
      w_d:  [n, ti, H]    input-major down-proj weight, tile-major.
    """
    two_I, H = w_gate_up.shape
    I = two_I // 2
    assert w_down.shape == (H, I)

    if ti is None:
        # v5e: bigger ti amortises the f32 accumulator RMW over more MXU work.
        ti = 1024 if _tpu_generation() == "v5e" else 512
    ti = _pick_divisor_tile(I, ti)
    n = I // ti

    wg = jnp.transpose(w_gate_up[:I, :])  # [H, I] input-major gate
    wu = jnp.transpose(w_gate_up[I:, :])  # [H, I] input-major up
    w_gu = jnp.concatenate(
        [wg.reshape(H, n, ti), wu.reshape(H, n, ti)], axis=-1
    )  # [H, n, 2*ti]
    w_gu = jnp.transpose(w_gu, (1, 0, 2))          # [n, H, 2*ti] tile-major
    w_d = jnp.transpose(w_down).reshape(n, ti, H)  # [n, ti, H]   tile-major
    return w_gu, w_d


# ----------------------------------------------------------------------------
# Forward
# ----------------------------------------------------------------------------
@functools.partial(
    jax.jit, static_argnames=("tm", "split", "buffer_weights", "vmem_limit")
)
def _llama_mlp_impl(x2, w_gu, w_d, *, tm, split, buffer_weights, vmem_limit):
    T, H = x2.shape
    n, H_w, two_ti = w_gu.shape
    ti = two_ti // 2

    T_pad = _round_up(T, tm)
    if T_pad != T:
        x2 = jnp.pad(x2, ((0, T_pad - T), (0, 0)))
    n_tok = T_pad // tm
    n_i = n // split  # intermediate tiles per core split

    red_axis = 2 if split > 1 else 1
    kernel = functools.partial(_llama_mlp_kernel, red_axis=red_axis)

    # Decode regime: 3-deep buffering on the weight streams keeps HBM busy.
    weight_kwargs = {"pipeline_mode": pl.Buffered(3)} if buffer_weights else {}

    if split == 1:
        grid = (n_tok, n)
        in_specs = [
            pl.BlockSpec((tm, H), lambda i, j: (i, 0)),                 # x
            pl.BlockSpec((None, H, two_ti), lambda i, j: (j, 0, 0),
                         **weight_kwargs),                              # gate|up tile
            pl.BlockSpec((None, ti, H), lambda i, j: (j, 0, 0),
                         **weight_kwargs),                              # down tile
        ]
        out_specs = pl.BlockSpec((tm, H), lambda i, j: (i, 0))          # lane-dense
        out_shape = jax.ShapeDtypeStruct((T_pad, H), x2.dtype)
        dims = ("parallel", "arbitrary")
    else:
        # Decode on a 2-TensorCore chip: split the I reduction across cores;
        # each core writes an f32 partial (T_pad, H) slab, summed below.
        grid = (split, n_tok, n_i)
        in_specs = [
            pl.BlockSpec((tm, H), lambda c, i, j: (i, 0)),
            pl.BlockSpec((None, H, two_ti),
                         lambda c, i, j: (c * n_i + j, 0, 0), **weight_kwargs),
            pl.BlockSpec((None, ti, H),
                         lambda c, i, j: (c * n_i + j, 0, 0), **weight_kwargs),
        ]
        out_specs = pl.BlockSpec((None, tm, H), lambda c, i, j: (c, i, 0))
        out_shape = jax.ShapeDtypeStruct((split, T_pad, H), jnp.float32)
        dims = ("parallel", "parallel", "arbitrary")

    out = pl.pallas_call(
        kernel,
        out_shape=out_shape,
        grid_spec=pltpu.PrefetchScalarGridSpec(
            num_scalar_prefetch=0,
            grid=grid,
            in_specs=in_specs,
            out_specs=out_specs,
            scratch_shapes=[pltpu.VMEM((tm, H), jnp.float32)],
        ),
        compiler_params=pltpu.CompilerParams(
            dimension_semantics=dims,
            vmem_limit_bytes=vmem_limit,
        ),
    )(x2, w_gu, w_d)

    if split > 1:
        out = jnp.sum(out, axis=0).astype(x2.dtype)
    if T_pad != T:
        out = out[:T]
    return out


def llama_mlp(x, w_gu, w_d, *, tm=None):
    """Fused LlamaMLP forward.

    x:    [..., H]        activations (leading dims flattened into tokens).
    w_gu: [n, H, 2*ti]    prepared merged gate|up weight (prepare_llama_mlp_weights).
    w_d:  [n, ti, H]      prepared down-proj weight.
    tm:   token tile; default is generation-aware (v6e 768, v7x 384, v5e 512),
          clamped for small token counts and auto-shrunk to fit VMEM.
    """
    orig_shape = x.shape
    H = orig_shape[-1]
    x2 = x.reshape(-1, H)
    T = x2.shape[0]

    n, H_w, two_ti = w_gu.shape
    ti = two_ti // 2
    assert H == H_w, "hidden size mismatch between x and prepared weights"
    assert w_d.shape == (n, ti, H), "w_d layout must match prepare_llama_mlp_weights"

    gen = _tpu_generation()
    cores = _tensorcores_per_chip(gen)
    cap = _vmem_capacity_bytes(gen)
    budget = max(cap - (12 << 20), 32 << 20)  # headroom for Mosaic internals

    b_in = jnp.dtype(x.dtype).itemsize
    b_w = jnp.dtype(w_gu.dtype).itemsize
    sub = _min_sublane(x.dtype)

    if tm is None:
        # Keep arithmetic intensity (~tm FLOP/byte on weight streaming) above
        # each generation's MXU/HBM crossover, within its VMEM budget.
        tm = {"v6e": 768, "v7": 384, "v5e": 512, "v5p": 512, "v4": 512}.get(gen, 512)
    tm = max(sub, min(int(tm), _round_up(T, sub)))
    # Auto-shrink until the (double-buffered) working set fits this generation.
    while tm > sub and _vmem_estimate(tm, ti, H, b_in, b_w, b_in, 2) > budget:
        tm = max(sub, _round_up(tm // 2, sub))

    T_pad = _round_up(T, tm)
    n_tok = T_pad // tm

    # Decode on a 2-core chip with a single token tile: split I across cores.
    split = 2 if (cores >= 2 and n_tok == 1 and n >= 2 and n % 2 == 0) else 1
    # Decode regime with enough weight tiles per core: deepen weight buffering.
    buffer_weights = bool(tm <= 32 and (n // split) >= 3)

    b_out = 4 if split > 1 else b_in
    wbuf = 3 if buffer_weights else 2
    est = _vmem_estimate(tm, ti, H, b_in, b_w, b_out, wbuf)
    vmem_limit = int(min(max(int(1.25 * est) + (4 << 20), 32 << 20), budget))

    out = _llama_mlp_impl(
        x2, w_gu, w_d,
        tm=int(tm), split=int(split),
        buffer_weights=bool(buffer_weights), vmem_limit=vmem_limit,
    )
    return out.reshape(orig_shape)


def llama_mlp_reference(x, w_gate_up, w_down):
    """Pure-JAX reference in the original torch weight layout."""
    I = w_gate_up.shape[0] // 2
    orig_shape = x.shape
    x2 = x.reshape(-1, orig_shape[-1])
    gate_up = x2 @ w_gate_up.T
    gate, up = gate_up[:, :I], gate_up[:, I:]
    act = gate * jax.nn.sigmoid(gate) * up
    return (act @ w_down.T).reshape(orig_shape)


# TODO(synk): quantized (quant_config) weight paths — fp8 weights on v7x,
# int8 on v5e/v6e with per-tile dequant after the dot — are not implemented.

if __name__ == "__main__":
    # Small shapes consistent with the module: batch=2, seq=4, hidden=32, intermediate=64.
    B, S, H, I = 2, 4, 32, 64
    key = jax.random.PRNGKey(0)
    k_x, k_gu, k_d = jax.random.split(key, 3)

    x = jax.random.normal(k_x, (B, S, H), dtype=jnp.float32)
    # Deterministic synthetic weights in PyTorch [out, in] layout.
    w_gate_up = jax.random.normal(k_gu, (2 * I, H), dtype=jnp.float32) * 0.05
    w_down = jax.random.normal(k_d, (H, I), dtype=jnp.float32) * 0.05

    # One-time load-time re-layout; ti is generation-aware and baked into shapes.
    w_gu, w_d = prepare_llama_mlp_weights(w_gate_up, w_down)

    out = llama_mlp(x, w_gu, w_d)
    out = jax.block_until_ready(out)

    ref = llama_mlp_reference(x, w_gate_up, w_down)
    assert out.shape == x.shape
    assert jnp.allclose(out, ref, atol=1e-4, rtol=1e-4), "mismatch vs reference"

    print("KERNEL_OK")
</pallas_src>

<mosaic_0001>
module attributes {stable_mosaic.version = 11 : i64} {
  func.func @_llama_mlp_kernel(%arg0: i32, %arg1: i32, %arg2: memref<8x32xf32, #tpu.memory_space<vmem>>, %arg3: memref<1x32x128xf32, #tpu.memory_space<vmem>>, %arg4: memref<1x64x32xf32, #tpu.memory_space<vmem>>, %arg5: memref<8x32xf32, #tpu.memory_space<vmem>>, %arg6: memref<8x32xf32, #tpu.memory_space<vmem>>) attributes {dimension_semantics = [#tpu.dimension_semantics<parallel>, #tpu.dimension_semantics<arbitrary>], iteration_bounds = array<i64: 1, 1>, scalar_prefetch = 0 : i64, scratch_operands = 1 : i64, tpu.core_type = #tpu.core_type<tc>, window_params = [{transform_indices = @transform_0, window_bounds = array<i64: 8, 32>}, {transform_indices = @transform_1, window_bounds = array<i64: 1, 32, 128>}, {transform_indices = @transform_2, window_bounds = array<i64: 1, 64, 32>}, {transform_indices = @transform_3, window_bounds = array<i64: 8, 32>}]} {
    %c0_i32 = arith.constant 0 : i32
    %0 = arith.cmpi eq, %arg1, %c0_i32 : i32
    %1 = arith.extui %0 : i1 to i32
    %c0_i32_0 = arith.constant 0 : i32
    %2 = arith.cmpi ne, %1, %c0_i32_0 : i32
    scf.if %2 {
      %cst_16 = arith.constant 0.000000e+00 : f32
      %25 = vector.broadcast %cst_16 : f32 to vector<8x32xf32>
      %c0_17 = arith.constant 0 : index
      %c0_18 = arith.constant 0 : index
      %26 = vector.load %arg6[%c0_17, %c0_18] : memref<8x32xf32, #tpu.memory_space<vmem>>, vector<8x32xf32>
      tpu.vector_store %arg6[%c0_17, %c0_18], %25 {strides = array<i32>} : memref<8x32xf32, #tpu.memory_space<vmem>>, vector<8x32xf32>,
    } else {
    }
    %c0 = arith.constant 0 : index
    %c0_1 = arith.constant 0 : index
    %3 = vector.load %arg2[%c0, %c0_1] : memref<8x32xf32, #tpu.memory_space<vmem>>, vector<8x32xf32>
    %c0_2 = arith.constant 0 : index
    %c0_3 = arith.constant 0 : index
    %c0_4 = arith.constant 0 : index
    %4 = vector.load %arg3[%c0_2, %c0_3, %c0_4] : memref<1x32x128xf32, #tpu.memory_space<vmem>>, vector<1x32x128xf32>
    %5 = vector.shape_cast %4 : vector<1x32x128xf32> to vector<32x128xf32>
    %cst = arith.constant dense<0.000000e+00> : vector<8x128xf32>
    %6 = tpu.matmul %3, %5, %cst {dimension_numbers = #tpu.dot_dimension_numbers<[1], [0], [0], [1], [0, 0, 1, 1], [], []>} : vector<8x32xf32>, vector<32x128xf32>, vector<8x128xf32> -> vector<8x128xf32>
    %7 = vector.extract_strided_slice %6 {offsets = [0, 0], sizes = [8, 64], strides = [1, 1]} : vector<8x128xf32> to vector<8x64xf32>
    %8 = vector.extract_strided_slice %6 {offsets = [0, 64], sizes = [8, 64], strides = [1, 1]} : vector<8x128xf32> to vector<8x64xf32>
    %9 = arith.negf %7 : vector<8x64xf32>
    %10 = math.exp %9 : vector<8x64xf32>
    %cst_5 = arith.constant 1.000000e+00 : f32
    %11 = vector.broadcast %cst_5 : f32 to vector<8x64xf32>
    %12 = arith.addf %11, %10 : vector<8x64xf32>
    %13 = arith.divf %11, %12 : vector<8x64xf32>
    %14 = arith.mulf %7, %13 : vector<8x64xf32>
    %15 = arith.mulf %14, %8 : vector<8x64xf32>
    %c0_6 = arith.constant 0 : index
    %c0_7 = arith.constant 0 : index
    %16 = vector.load %arg6[%c0_6, %c0_7] : memref<8x32xf32, #tpu.memory_space<vmem>>, vector<8x32xf32>
    %c0_8 = arith.constant 0 : index
    %c0_9 = arith.constant 0 : index
    %c0_10 = arith.constant 0 : index
    %17 = vector.load %arg4[%c0_8, %c0_9, %c0_10] : memref<1x64x32xf32, #tpu.memory_space<vmem>>, vector<1x64x32xf32>
    %18 = vector.shape_cast %17 : vector<1x64x32xf32> to vector<64x32xf32>
    %cst_11 = arith.constant dense<0.000000e+00> : vector<8x32xf32>
    %19 = tpu.matmul %15, %18, %cst_11 {dimension_numbers = #tpu.dot_dimension_numbers<[1], [0], [0], [1], [0, 0, 1, 1], [], []>} : vector<8x64xf32>, vector<64x32xf32>, vector<8x32xf32> -> vector<8x32xf32>
    %20 = arith.addf %16, %19 : vector<8x32xf32>
    %c0_12 = arith.constant 0 : index
    %c0_13 = arith.constant 0 : index
    %21 = vector.load %arg6[%c0_12, %c0_13] : memref<8x32xf32, #tpu.memory_space<vmem>>, vector<8x32xf32>
    tpu.vector_store %arg6[%c0_12, %c0_13], %20 {strides = array<i32>} : memref<8x32xf32, #tpu.memory_space<vmem>>, vector<8x32xf32>,
    %c0_i32_14 = arith.constant 0 : i32
    %22 = arith.cmpi eq, %arg1, %c0_i32_14 : i32
    %23 = arith.extui %22 : i1 to i32
    %c0_i32_15 = arith.constant 0 : i32
    %24 = arith.cmpi ne, %23, %c0_i32_15 : i32
    scf.if %24 {
      %c0_16 = arith.constant 0 : index
      %c0_17 = arith.constant 0 : index
      %25 = vector.load %arg6[%c0_16, %c0_17] : memref<8x32xf32, #tpu.memory_space<vmem>>, vector<8x32xf32>
      %c0_18 = arith.constant 0 : index
      %c0_19 = arith.constant 0 : index
      %26 = vector.load %arg5[%c0_18, %c0_19] : memref<8x32xf32, #tpu.memory_space<vmem>>, vector<8x32xf32>
      tpu.vector_store %arg5[%c0_18, %c0_19], %25 {strides = array<i32>} : memref<8x32xf32, #tpu.memory_space<vmem>>, vector<8x32xf32>,
    } else {
    }
    return
  }
  func.func @transform_0(%arg0: i32, %arg1: i32) -> (i32, i32) {
    %c0_i32 = arith.constant 0 : i32
    %c0_i32_0 = arith.constant 0 : i32
    return %arg0, %c0_i32 : i32, i32
  }
  func.func @transform_1(%arg0: i32, %arg1: i32) -> (i32, i32, i32) {
    %c0_i32 = arith.constant 0 : i32
    %c0_i32_0 = arith.constant 0 : i32
    %c0_i32_1 = arith.constant 0 : i32
    return %arg1, %c0_i32, %c0_i32_0 : i32, i32, i32
  }
  func.func @transform_2(%arg0: i32, %arg1: i32) -> (i32, i32, i32) {
    %c0_i32 = arith.constant 0 : i32
    %c0_i32_0 = arith.constant 0 : i32
    %c0_i32_1 = arith.constant 0 : i32
    return %arg1, %c0_i32, %c0_i32_0 : i32, i32, i32
  }
  func.func @transform_3(%arg0: i32, %arg1: i32) -> (i32, i32) {
    %c0_i32 = arith.constant 0 : i32
    %c0_i32_0 = arith.constant 0 : i32
    return %arg0, %c0_i32 : i32, i32
  }
}

</mosaic_0001>

<llo_original>
// kernel: _llama_mlp_impl.1
$region0: #{_llama_mlp_impl.1}
  #allocation0 [shape = 'u32[]', space=smem, size = 0x4, offset = 0x4, fixed_abs, tag = 'smem constant byte address 0x4 - core index']
  #allocation1 [shape = 'u32[144,128]{1,0:T(1,128)}', space=vmem, size = 0x12000, scoped, tag = 'internal scratch']
  #allocation2 [shape = 'f32[8,32]{1,0:T(8,128)}', space=vmem, size = 0x1000, scoped, tag = 'scratch operand']
  %s0 = inlined_call_operand.vmem [shape: f32[8,32], index: 0, kind: input, shape index: {}]
  %s1 = inlined_call_operand.vmem [shape: f32[1,32,128], index: 1, kind: input, shape index: {}]
  %s2 = inlined_call_operand.vmem [shape: f32[1,64,32], index: 2, kind: input, shape index: {}]
  %s3 = inlined_call_operand.hbm [shape: f32[8,32], index: 3, kind: output, shape index: {}]
  %s4 = sld [smem:[#allocation0]]
  $region30: #{_llama_mlp_impl.1} parent=0
    _
  %s6 = ssub.s32 1, %s4
  %s7 = scalar_select 0, %s6, %s4
  $region1: #{_llama_mlp_impl.1} parent=0
    #allocation3 [shape = 'u8[4096]{0}', space=vmem, size = 0x1000, scoped, tag = 'output window, operand 0, single buffered']
    #allocation4 [shape = 's32[1]{0}', space=sflag, size = 0x4, scoped, tag = 'scoped memory for _llama_mlp_impl.1']
    %8 = vsyncpa [#allocation4], 0
    // Predicated region
    $region2: #{_llama_mlp_impl.1} parent=1 // pred_check
      _
    $region3: #{_llama_mlp_impl.1} parent=1 // pred_check_branch
      %10 = sbr.rel (0) target = $region5
    $region4: #{_llama_mlp_impl.1} parent=1 // pred_region
      _
    $region5: #{_llama_mlp_impl.1} parent=1 // pred_fallthru
      _
    // Predicated region
    $region6: #{_llama_mlp_impl.1} parent=1 // pred_check
      _
    $region7: #{_llama_mlp_impl.1} parent=1 // pred_check_branch
      %12 = sbr.rel (0) target = $region9
    $region8: #{_llama_mlp_impl.1} parent=1 // pred_region
      _
    $region9: #{_llama_mlp_impl.1} parent=1 // pred_fallthru
      _
    // Predicated region
    $region10: #{_llama_mlp_impl.1} parent=1 // pred_check
      _
    $region11: #{_llama_mlp_impl.1} parent=1 // pred_check_branch
      %14 = sbr.rel (0) target = $region13
    $region12: #{_llama_mlp_impl.1} parent=1 // pred_region
      _
    $region13: #{_llama_mlp_impl.1} parent=1 // pred_fallthru
      _
    %p15 = scmp.eq.s32.totalorder 0, 0
    // Predicated region
    $region14: #{_llama_mlp_impl.1} parent=1 // pred_check
      %p16 = pneg %p15
    $region15: #{_llama_mlp_impl.1} parent=1 // pred_check_branch
      %18 = sbr.rel (%p16) target = $region17
    $region16: #{_llama_mlp_impl.1} parent=1 // pred_region
      %vm19 = vcmask 261120
      %20 = vst.msk [vmem:[#allocation2] sm:$0xff] %vm19, 0.0
    $region17: #{_llama_mlp_impl.1} parent=1 // pred_fallthru
      _
    %v21 = vld [vmem:[%s0] sm:$0xff]
    %v22 = vld [vmem:[%s1] sm:$0xff]
    %v23 = vld [vmem:[%s1 + $0x8] sm:$0xff]
    %v24 = vld [vmem:[%s1 + $0x10] sm:$0xff]
    %v25 = vld [vmem:[%s1 + $0x18] sm:$0xff]
    %vm26 = vcmask 261120
    %v28 = vsel %vm26, %v21, 0
    %30 = vmatprep.subr.mxu0 0.0
    %31 = vmatpush1.msra.mxu0 %v22
    %32 = vmatprep.subr.mxu0 0.0
    %33 = vmatpush1.msra.mxu0 %v23
    %34 = vmatprep.subr.mxu0 0.0
    %35 = vmatpush1.msra.mxu0 %v24
    %36 = vmatprep.subr.mxu0 0.0
    %37 = vmatpush1.msra.mxu0 %v25
    %38 = vmatprep.subr.mxu0 0.0
    %39 = vmatpush1.msra.mxu0 0.0
    %40 = vmatprep.subr.mxu0 0.0
    %41 = vmatpush1.msra.mxu0 0.0
    %42 = vmatprep.subr.mxu0 0.0
    %43 = vmatpush1.msra.mxu0 0.0
    %44 = vmatprep.subr.mxu0 0.0
    %45 = vmatpush1.msra.mxu0 0.0
    %46 = vmatprep.subr.mxu0 0.0
    %47 = vmatpush1.msra.mxu0 0.0
    %48 = vmatprep.subr.mxu0 0.0
    %49 = vmatpush1.msra.mxu0 0.0
    %50 = vmatprep.subr.mxu0 0.0
    %51 = vmatpush1.msra.mxu0 0.0
    %52 = vmatprep.subr.mxu0 0.0
    %53 = vmatpush1.msra.mxu0 0.0
    %54 = vmatprep.subr.mxu0 0.0
    %55 = vmatpush1.msra.mxu0 0.0
    %56 = vmatprep.subr.mxu0 0.0
    %57 = vmatpush1.msra.mxu0 0.0
    %58 = vmatprep.subr.mxu0 0.0
    %59 = vmatpush1.msra.mxu0 0.0
    %60 = vmatprep.subr.mxu0 0.0
    %61 = vmatpush1.msra.mxu0 0.0
    %62 = vmatprep.subr.mxu0 0.0
    %63 = vmatpush1.msra.mxu0 0.0
    %64 = vmatprep.subr.mxu0 0.0
    %65 = vmatpush1.msra.mxu0 0.0
    %66 = vmatprep.subr.mxu0 0.0
    %67 = vmatpush1.msra.mxu0 0.0
    %68 = vmatprep.subr.mxu0 0.0
    %69 = vmatpush1.msra.mxu0 0.0
    %70 = vmatprep.subr.mxu0 0.0
    %71 = vmatpush1.msra.mxu0 0.0
    %72 = vmatprep.subr.mxu0 0.0
    %73 = vmatpush1.msra.mxu0 0.0
    %74 = vmatprep.subr.mxu0 0.0
    %75 = vmatpush1.msra.mxu0 0.0
    %76 = vmatprep.subr.mxu0 0.0
    %77 = vmatpush1.msra.mxu0 0.0
    %78 = vmatprep.subr.mxu0 0.0
    %79 = vmatpush1.msra.mxu0 0.0
    %80 = vmatprep.subr.mxu0 0.0
    %81 = vmatpush1.msra.mxu0 0.0
    %82 = vmatprep.subr.mxu0 0.0
    %83 = vmatpush1.msra.mxu0 0.0
    %84 = vmatprep.subr.mxu0 0.0
    %85 = vmatpush1.msra.mxu0 0.0
    %86 = vmatprep.subr.mxu0 0.0
    %87 = vmatpush1.msra.mxu0 0.0
    %88 = vmatprep.subr.mxu0 0.0
    %89 = vmatpush1.msra.mxu0 0.0
    %90 = vmatprep.subr.mxu0 0.0
    %91 = vmatpush1.msra.mxu0 0.0
    %92 = vmatprep.subr.mxu0 0.0
    %93 = vmatpush1.msra.mxu0 0.0
    %94 = vmatprep.mubr.f32.mxu0 0.0
    %95 = vmatmul.mubr.f32.gmra.mrb[0].mxu0 %v28
    %v96 = vpop.f32.mrb[0].mxu0
    %v97 = vadd.f32 0.0, %v96
    %v98 = vpop.f32.mrb[0].mxu0
    %99 = vdwg.mxu0
    %v100 = vxor.u32 %v97, 2147483648
    %v101 = vmul.f32 %v100, 1.442695
    %v102 = vpow.pop %v101
    %v103 = vadd.f32 %v102, 1.0
    %v104 = vrcp.pop %v103
    %v105 = vmul.f32 1.0, %v104
    %v106 = vmul.f32 %v97, %v105
    %108 = vrot.lane.b32.xlu0 %v97, 64
    %v109 = vpop.permute.xlu0 %108
    %v111 = vmul.f32 %v106, %v109
    %v112 = vld [vmem:[#allocation2] sm:$0xff]
    %v113 = vld [vmem:[%s2] sm:$0xff]
    %v114 = vld [vmem:[%s2 + $0x8] sm:$0xff]
    %v115 = vld [vmem:[%s2 + $0x10] sm:$0xff]
    %v116 = vld [vmem:[%s2 + $0x18] sm:$0xff]
    %v117 = vld [vmem:[%s2 + $0x20] sm:$0xff]
    %v118 = vld [vmem:[%s2 + $0x28] sm:$0xff]
    %v119 = vld [vmem:[%s2 + $0x30] sm:$0xff]
    %v120 = vld [vmem:[%s2 + $0x38] sm:$0xff]
    %vm121 = vcmask 523264
    %v123 = vsel %vm121, %v111, 0
    %125 = vmatprep.subr.mxu0 0.0
    %126 = vmatpush1.msra.mxu0 %v113
    %127 = vmatprep.subr.mxu0 0.0
    %128 = vmatpush1.msra.mxu0 %v114
    %129 = vmatprep.subr.mxu0 0.0
    %130 = vmatpush1.msra.mxu0 %v115
    %131 = vmatprep.subr.mxu0 0.0
    %132 = vmatpush1.msra.mxu0 %v116
    %133 = vmatprep.subr.mxu0 0.0
    %134 = vmatpush1.msra.mxu0 %v117
    %135 = vmatprep.subr.mxu0 0.0
    %136 = vmatpush1.msra.mxu0 %v118
    %137 = vmatprep.subr.mxu0 0.0
    %138 = vmatpush1.msra.mxu0 %v119
    %139 = vmatprep.subr.mxu0 0.0
    %140 = vmatpush1.msra.mxu0 %v120
    %141 = vmatprep.subr.mxu0 0.0
    %142 = vmatpush1.msra.mxu0 0.0
    %143 = vmatprep.subr.mxu0 0.0
    %144 = vmatpush1.msra.mxu0 0.0
    %145 = vmatprep.subr.mxu0 0.0
    %146 = vmatpush1.msra.mxu0 0.0
    %147 = vmatprep.subr.mxu0 0.0
    %148 = vmatpush1.msra.mxu0 0.0
    %149 = vmatprep.subr.mxu0 0.0
    %150 = vmatpush1.msra.mxu0 0.0
    %151 = vmatprep.subr.mxu0 0.0
    %152 = vmatpush1.msra.mxu0 0.0
    %153 = vmatprep.subr.mxu0 0.0
    %154 = vmatpush1.msra.mxu0 0.0
    %155 = vmatprep.subr.mxu0 0.0
    %156 = vmatpush1.msra.mxu0 0.0
    %157 = vmatprep.subr.mxu0 0.0
    %158 = vmatpush1.msra.mxu0 0.0
    %159 = vmatprep.subr.mxu0 0.0
    %160 = vmatpush1.msra.mxu0 0.0
    %161 = vmatprep.subr.mxu0 0.0
    %162 = vmatpush1.msra.mxu0 0.0
    %163 = vmatprep.subr.mxu0 0.0
    %164 = vmatpush1.msra.mxu0 0.0
    %165 = vmatprep.subr.mxu0 0.0
    %166 = vmatpush1.msra.mxu0 0.0
    %167 = vmatprep.subr.mxu0 0.0
    %168 = vmatpush1.msra.mxu0 0.0
    %169 = vmatprep.subr.mxu0 0.0
    %170 = vmatpush1.msra.mxu0 0.0
    %171 = vmatprep.subr.mxu0 0.0
    %172 = vmatpush1.msra.mxu0 0.0
    %173 = vmatprep.subr.mxu0 0.0
    %174 = vmatpush1.msra.mxu0 0.0
    %175 = vmatprep.subr.mxu0 0.0
    %176 = vmatpush1.msra.mxu0 0.0
    %177 = vmatprep.subr.mxu0 0.0
    %178 = vmatpush1.msra.mxu0 0.0
    %179 = vmatprep.subr.mxu0 0.0
    %180 = vmatpush1.msra.mxu0 0.0
    %181 = vmatprep.subr.mxu0 0.0
    %182 = vmatpush1.msra.mxu0 0.0
    %183 = vmatprep.subr.mxu0 0.0
    %184 = vmatpush1.msra.mxu0 0.0
    %185 = vmatprep.subr.mxu0 0.0
    %186 = vmatpush1.msra.mxu0 0.0
    %187 = vmatprep.subr.mxu0 0.0
    %188 = vmatpush1.msra.mxu0 0.0
    %189 = vmatprep.mubr.f32.mxu0 0.0
    %190 = vmatmul.mubr.f32.gmra.mrb[0].mxu0 %v123
    %v191 = vpop.f32.mrb[0].mxu0
    %v192 = vadd.f32 0.0, %v191
    %v193 = vpop.f32.mrb[0].mxu0
    %194 = vdwg.mxu0
    %v195 = vadd.f32 %v112, %v192
    %196 = vst.msk [vmem:[#allocation2] sm:$0xff] %vm26, %v195
    // Predicated region
    $region18: #{_llama_mlp_impl.1} parent=1 // pred_check
      %p197 = pneg %p15
    $region19: #{_llama_mlp_impl.1} parent=1 // pred_check_branch
      %199 = sbr.rel (%p197) target = $region21
    $region20: #{_llama_mlp_impl.1} parent=1 // pred_region
      %v200 = vld [vmem:[#allocation2] sm:$0xff]
      %201 = vst.msk [vmem:[#allocation3] sm:$0xff] %vm26, %v200
    $region21: #{_llama_mlp_impl.1} parent=1 // pred_fallthru
      _
    // Predicated region
    $region22: #{_llama_mlp_impl.1} parent=1 // pred_check
      _
    $region23: #{_llama_mlp_impl.1} parent=1 // pred_check_branch
      %203 = sbr.rel (0) target = $region25
    $region24: #{_llama_mlp_impl.1} parent=1 // pred_region
      %s205 = ssub.s32 128, 128
      %206 = vsyncadd [#allocation4], %s205
      %s208 = sshll.u32 [#allocation3], 4
      %s209 = int_to_ptr.vmem [resolvable:$true] %s208
      %211 = dma.vmem_to_hbm [thread:$0]  %s209, 128, %s3, [#allocation4]
    $region25: #{_llama_mlp_impl.1} parent=1 // pred_fallthru
      _
    // Predicated region
    $region26: #{_llama_mlp_impl.1} parent=1 // pred_check
      _
    $region27: #{_llama_mlp_impl.1} parent=1 // pred_check_branch
      %213 = sbr.rel (0) target = $region29
    $region28: #{_llama_mlp_impl.1} parent=1 // pred_region
      %214 = dma.done [#allocation4], 128
    $region29: #{_llama_mlp_impl.1} parent=1 // pred_fallthru
      _
    %215 = vsyncpa [#allocation4], 1

</llo_original>
